<compile_context>
chip_gen: v7x
topology: tpu7x:2x2x1
jax: 0.10.0
libtpu: 0.0.40
codegen_flags: <defaults>
</compile_context>

<pallas_src>
import functools

import jax
import jax.numpy as jnp
from jax.experimental import pallas as pl
from jax.experimental.pallas import tpu as pltpu


def backbone_kernel(x_ref, w1_ref, b1_ref, w2_ref, b2_ref, o_ref):
    # fc1 (f32 MXU, f32 accumulate) + bias + LeakyReLU (slope 0.01)
    h = jnp.dot(x_ref[...], w1_ref[...],
                preferred_element_type=jnp.float32) + b1_ref[...]
    h = jnp.where(h >= 0, h, 0.01 * h)

    # fc2 + bias + LeakyReLU
    y = jnp.dot(h, w2_ref[...],
                preferred_element_type=jnp.float32) + b2_ref[...]
    y = jnp.where(y >= 0, y, 0.01 * y)

    # L2 normalize along feature dim (dim=1), keepdim, + 1e-8 eps.
    # sqrt + reciprocal both land in the otherwise-idle EUP slot.
    norm = jnp.sqrt(jnp.sum(y * y, axis=1, keepdims=True))
    inv = pl.reciprocal(norm + 1e-8, approx=True)
    o_ref[...] = (y * inv).astype(o_ref.dtype)


def backbone_net(x, w1, b1, w2, b2, *, tile_b=1024):
    batch, in_dim = x.shape
    hid = w1.shape[1]
    out_dim = w2.shape[1]

    # Batch tile: either the whole batch (legal for any size, since a block
    # equal to the full dim is always allowed) or a multiple-of-8 tile with a
    # partial last block handled by Pallas' ragged-edge masking.
    if batch <= tile_b:
        tb = batch
    else:
        tb = max(8, (min(tile_b, batch) // 8) * 8)
    nb = pl.cdiv(batch, tb)

    cost = pl.CostEstimate(
        flops=2 * batch * (in_dim * hid + hid * out_dim),
        transcendentals=2 * batch,  # sqrt + reciprocal per row
        bytes_accessed=(batch * in_dim * 4 + batch * out_dim * 4
                        + in_dim * hid * 4 + hid * out_dim * 4
                        + (hid + out_dim) * 4),
    )

    return pl.pallas_call(
        backbone_kernel,
        out_shape=jax.ShapeDtypeStruct((batch, out_dim), jnp.float32),
        grid=(nb,),
        in_specs=[
            pl.BlockSpec((tb, in_dim), lambda i: (i, 0)),       # x tile
            pl.BlockSpec((in_dim, hid), lambda i: (0, 0)),      # W1 (resident)
            pl.BlockSpec((1, hid), lambda i: (0, 0)),           # b1 (resident)
            pl.BlockSpec((hid, out_dim), lambda i: (0, 0)),     # W2 (resident)
            pl.BlockSpec((1, out_dim), lambda i: (0, 0)),       # b2 (resident)
        ],
        out_specs=pl.BlockSpec((tb, out_dim), lambda i: (i, 0)),
        compiler_params=pltpu.CompilerParams(
            dimension_semantics=("parallel",)),
        cost_estimate=cost,
    )(x, w1, b1, w2, b2)


if __name__ == "__main__":
    # Small shapes consistent with the module: Linear layers on [batch, dim].
    batch, input_dim, hidden_dim, output_dim = 64, 32, 64, 16

    key = jax.random.PRNGKey(0)
    k_x, k_w1, k_b1, k_w2, k_b2 = jax.random.split(key, 5)

    x = jax.random.normal(k_x, (batch, input_dim), dtype=jnp.float32)

    # Deterministic init (Kaiming-uniform-ish bounds like PyTorch Linear).
    bound1 = 1.0 / (input_dim ** 0.5)
    w1 = jax.random.uniform(k_w1, (input_dim, hidden_dim), jnp.float32, -bound1, bound1)
    b1 = jax.random.uniform(k_b1, (1, hidden_dim), jnp.float32, -bound1, bound1)
    bound2 = 1.0 / (hidden_dim ** 0.5)
    w2 = jax.random.uniform(k_w2, (hidden_dim, output_dim), jnp.float32, -bound2, bound2)
    b2 = jax.random.uniform(k_b2, (1, output_dim), jnp.float32, -bound2, bound2)

    # Use a small tile here so the demo exercises a multi-step batch grid.
    run = jax.jit(functools.partial(backbone_net, tile_b=16))
    out = jax.block_until_ready(run(x, w1, b1, w2, b2))

    # Pure-JAX (f32) reference check.  Only remaining deviation from the exact
    # module math is the approximate EUP reciprocal used for normalization.
    def ref(x):
        h = x @ w1 + b1
        h = jnp.where(h >= 0, h, 0.01 * h)
        y = h @ w2 + b2
        y = jnp.where(y >= 0, y, 0.01 * y)
        return y / (jnp.linalg.norm(y, axis=1, keepdims=True) + 1e-8)

    assert out.shape == (batch, output_dim)
    assert jnp.allclose(out, ref(x), atol=5e-3, rtol=5e-3)
    print("KERNEL_OK")
</pallas_src>

<mosaic_0001>
module attributes {stable_mosaic.version = 11 : i64} {
  func.func @backbone_kernel(%arg0: i32, %arg1: memref<16x32xf32, #tpu.memory_space<vmem>>, %arg2: memref<32x64xf32, #tpu.memory_space<vmem>>, %arg3: memref<1x64xf32, #tpu.memory_space<vmem>>, %arg4: memref<64x16xf32, #tpu.memory_space<vmem>>, %arg5: memref<1x16xf32, #tpu.memory_space<vmem>>, %arg6: memref<16x16xf32, #tpu.memory_space<vmem>>) attributes {dimension_semantics = [#tpu.dimension_semantics<parallel>], iteration_bounds = array<i64: 4>, scalar_prefetch = 0 : i64, scratch_operands = 0 : i64, tpu.core_type = #tpu.core_type<tc>, window_params = [{transform_indices = @transform_0, window_bounds = array<i64: 16, 32>}, {pipeline_mode = #tpu.pipeline_mode<synchronous>, transform_indices = @transform_1, window_bounds = array<i64: 32, 64>}, {pipeline_mode = #tpu.pipeline_mode<synchronous>, transform_indices = @transform_2, window_bounds = array<i64: 1, 64>}, {pipeline_mode = #tpu.pipeline_mode<synchronous>, transform_indices = @transform_3, window_bounds = array<i64: 64, 16>}, {pipeline_mode = #tpu.pipeline_mode<synchronous>, transform_indices = @transform_4, window_bounds = array<i64: 1, 16>}, {transform_indices = @transform_5, window_bounds = array<i64: 16, 16>}]} {
    %c0 = arith.constant 0 : index
    %c0_0 = arith.constant 0 : index
    %0 = vector.load %arg1[%c0, %c0_0] : memref<16x32xf32, #tpu.memory_space<vmem>>, vector<16x32xf32>
    %c0_1 = arith.constant 0 : index
    %c0_2 = arith.constant 0 : index
    %1 = vector.load %arg2[%c0_1, %c0_2] : memref<32x64xf32, #tpu.memory_space<vmem>>, vector<32x64xf32>
    %cst = arith.constant dense<0.000000e+00> : vector<16x64xf32>
    %2 = tpu.matmul %0, %1, %cst {dimension_numbers = #tpu.dot_dimension_numbers<[1], [0], [0], [1], [0, 0, 1, 1], [], []>} : vector<16x32xf32>, vector<32x64xf32>, vector<16x64xf32> -> vector<16x64xf32>
    %c0_3 = arith.constant 0 : index
    %c0_4 = arith.constant 0 : index
    %3 = vector.load %arg3[%c0_3, %c0_4] : memref<1x64xf32, #tpu.memory_space<vmem>>, vector<1x64xf32>
    %4 = vector.broadcast %3 : vector<1x64xf32> to vector<16x64xf32>
    %5 = arith.addf %2, %4 : vector<16x64xf32>
    %cst_5 = arith.constant 0.000000e+00 : f32
    %6 = vector.broadcast %cst_5 : f32 to vector<16x64xf32>
    %7 = arith.cmpf oge, %5, %6 : vector<16x64xf32>
    %cst_6 = arith.constant 0.00999999977 : f32
    %8 = vector.broadcast %cst_6 : f32 to vector<16x64xf32>
    %9 = arith.mulf %8, %5 : vector<16x64xf32>
    %10 = arith.select %7, %5, %9 : vector<16x64xi1>, vector<16x64xf32>
    %c0_7 = arith.constant 0 : index
    %c0_8 = arith.constant 0 : index
    %11 = vector.load %arg4[%c0_7, %c0_8] : memref<64x16xf32, #tpu.memory_space<vmem>>, vector<64x16xf32>
    %cst_9 = arith.constant dense<0.000000e+00> : vector<16x16xf32>
    %12 = tpu.matmul %10, %11, %cst_9 {dimension_numbers = #tpu.dot_dimension_numbers<[1], [0], [0], [1], [0, 0, 1, 1], [], []>} : vector<16x64xf32>, vector<64x16xf32>, vector<16x16xf32> -> vector<16x16xf32>
    %c0_10 = arith.constant 0 : index
    %c0_11 = arith.constant 0 : index
    %13 = vector.load %arg5[%c0_10, %c0_11] : memref<1x16xf32, #tpu.memory_space<vmem>>, vector<1x16xf32>
    %14 = vector.broadcast %13 : vector<1x16xf32> to vector<16x16xf32>
    %15 = arith.addf %12, %14 : vector<16x16xf32>
    %cst_12 = arith.constant 0.000000e+00 : f32
    %16 = vector.broadcast %cst_12 : f32 to vector<16x16xf32>
    %17 = arith.cmpf oge, %15, %16 : vector<16x16xf32>
    %cst_13 = arith.constant 0.00999999977 : f32
    %18 = vector.broadcast %cst_13 : f32 to vector<16x16xf32>
    %19 = arith.mulf %18, %15 : vector<16x16xf32>
    %20 = arith.select %17, %15, %19 : vector<16x16xi1>, vector<16x16xf32>
    %21 = arith.mulf %20, %20 : vector<16x16xf32>
    %cst_14 = arith.constant dense<0.000000e+00> : vector<16xf32>
    %22 = vector.multi_reduction <add>, %21, %cst_14 [1] : vector<16x16xf32> to vector<16xf32>
    %23 = vector.shape_cast %22 : vector<16xf32> to vector<16x1xf32>
    %24 = math.sqrt %23 : vector<16x1xf32>
    %cst_15 = arith.constant 9.99999993E-9 : f32
    %25 = vector.broadcast %cst_15 : f32 to vector<16x1xf32>
    %26 = arith.addf %24, %25 : vector<16x1xf32>
    %27 = tpu.reciprocal %26 {approx = true} : vector<16x1xf32> -> vector<16x1xf32>
    %28 = vector.broadcast %27 : vector<16x1xf32> to vector<16x16xf32>
    %29 = arith.mulf %20, %28 : vector<16x16xf32>
    %c0_16 = arith.constant 0 : index
    %c0_17 = arith.constant 0 : index
    %30 = vector.load %arg6[%c0_16, %c0_17] : memref<16x16xf32, #tpu.memory_space<vmem>>, vector<16x16xf32>
    tpu.vector_store %arg6[%c0_16, %c0_17], %29 {strides = array<i32>} : memref<16x16xf32, #tpu.memory_space<vmem>>, vector<16x16xf32>,
    return
  }
  func.func @transform_0(%arg0: i32) -> (i32, i32) {
    %c0_i32 = arith.constant 0 : i32
    %c0_i32_0 = arith.constant 0 : i32
    return %arg0, %c0_i32 : i32, i32
  }
  func.func @transform_1(%arg0: i32) -> (i32, i32) {
    %c0_i32 = arith.constant 0 : i32
    %c0_i32_0 = arith.constant 0 : i32
    %c0_i32_1 = arith.constant 0 : i32
    return %c0_i32, %c0_i32_0 : i32, i32
  }
  func.func @transform_2(%arg0: i32) -> (i32, i32) {
    %c0_i32 = arith.constant 0 : i32
    %c0_i32_0 = arith.constant 0 : i32
    %c0_i32_1 = arith.constant 0 : i32
    return %c0_i32, %c0_i32_0 : i32, i32
  }
  func.func @transform_3(%arg0: i32) -> (i32, i32) {
    %c0_i32 = arith.constant 0 : i32
    %c0_i32_0 = arith.constant 0 : i32
    %c0_i32_1 = arith.constant 0 : i32
    return %c0_i32, %c0_i32_0 : i32, i32
  }
  func.func @transform_4(%arg0: i32) -> (i32, i32) {
    %c0_i32 = arith.constant 0 : i32
    %c0_i32_0 = arith.constant 0 : i32
    %c0_i32_1 = arith.constant 0 : i32
    return %c0_i32, %c0_i32_0 : i32, i32
  }
  func.func @transform_5(%arg0: i32) -> (i32, i32) {
    %c0_i32 = arith.constant 0 : i32
    %c0_i32_0 = arith.constant 0 : i32
    return %arg0, %c0_i32 : i32, i32
  }
}

</mosaic_0001>

<llo_original>
// kernel: backbone_net.1
$region0: #{backbone_net.1}
  #allocation0 [shape = 'u32[]', space=smem, size = 0x4, offset = 0x4, fixed_abs, tag = 'smem constant byte address 0x4 - core index']
  #allocation1 [shape = 'u32[144,128]{1,0:T(1,128)}', space=vmem, size = 0x12000, scoped, tag = 'internal scratch']
  %s0 = inlined_call_operand.vmem [shape: f32[64,32], index: 0, kind: input, shape index: {}]
  %s1 = inlined_call_operand.vmem [shape: f32[32,64], index: 1, kind: input, shape index: {}]
  %s2 = inlined_call_operand.vmem [shape: f32[1,64], index: 2, kind: input, shape index: {}]
  %s3 = inlined_call_operand.vmem [shape: f32[64,16], index: 3, kind: input, shape index: {}]
  %s4 = inlined_call_operand.vmem [shape: f32[1,16], index: 4, kind: input, shape index: {}]
  %s5 = inlined_call_operand.vmem [shape: f32[64,16], index: 5, kind: output, shape index: {}]
  %s6 = sld [smem:[#allocation0]]
  $region53: #{backbone_net.1} parent=0
    _
  %s8 = ssub.s32 1, %s6
  %s9 = scalar_select 0, %s8, %s6
  loop: start=0, step=1, limit=6
  $region2: #{backbone_net.1} parent=0 // loop_pre_header
    _
  $region3: #{backbone_net.1} parent=0 // loop_header
    %s11 = sphi 0, %s15
    %p12 = scmp.ge.s32.totalorder %s11, 6
    %s21 = sphi 0, %s23
    %s24 = sphi 0, %s21
    %s25 = sphi 0, %s24
    %s41 = sphi 0, %s25
    %s45 = sphi 0, %s45
    %s47 = sphi 0, %s45
    %s48 = sphi 0, %s47
    %s62 = sphi 0, %s48
    %s66 = sphi 0, %s66
    %s68 = sphi 0, %s66
    %s69 = sphi 0, %s68
    %s83 = sphi 0, %s69
    %s87 = sphi 0, %s87
    %s89 = sphi 0, %s87
    %s90 = sphi 0, %s89
    %s104 = sphi 0, %s90
    %s108 = sphi 0, %s108
    %s110 = sphi 0, %s108
    %s111 = sphi 0, %s110
    %s125 = sphi 0, %s111
    %s131 = sphi 0, %s133
    %s134 = sphi 0, %s131
    %s135 = sphi 0, %s134
    %s151 = sphi 0, %s135
  $region4: #{backbone_net.1} parent=0 // loop_header_branch
    %14 = sbr.rel (%p12) target = $region8
  $region5: #{backbone_net.1} parent=0 // loop_body
    %s16 = ssub.s32 %s11, 1
    %s17 = ssub.s32 %s11, 2
    %s18 = sadd.s32 %s11, 1
    %s19 = ssub.s32 %s11, %s18
    %p20 = scmp.eq.s32.totalorder %s19, 0
    %s22 = sadd.s32 %s21, 1
    %s23 = scalar_select %p20, %s21, %s22
    %p26 = pneg %p20
    %p27 = scmp.eq.s32.totalorder %s11, 3
    %p28 = por %p26, %p27
    %p29 = scmp.ne.s32.totalorder %s21, %s24
    %p30 = scmp.eq.s32.totalorder %s11, 0
    %p31 = por %p29, %p30
    %p32 = scmp.ne.s32.totalorder %s21, %s24
    %p33 = scmp.eq.s32.totalorder %s16, 3
    %p34 = por %p32, %p33
    %p35 = scmp.ne.s32.totalorder %s24, %s25
    %p36 = scmp.eq.s32.totalorder %s16, 0
    %p37 = por %p35, %p36
    %p38 = scmp.ne.s32.totalorder %s24, %s25
    %p39 = scmp.eq.s32.totalorder %s17, 3
    %p40 = por %p38, %p39
    %p42 = scmp.ne.s32.totalorder %s25, %s41
    %p43 = scmp.eq.s32.totalorder %s17, 0
    %p44 = por %p42, %p43
    %s46 = sadd.s32 %s45, 1
    %p49 = scmp.eq.s32.totalorder %s11, 3
    %p50 = scmp.ne.s32.totalorder %s45, %s47
    %p51 = scmp.eq.s32.totalorder %s11, 0
    %p52 = por %p50, %p51
    %p53 = scmp.ne.s32.totalorder %s45, %s47
    %p54 = scmp.eq.s32.totalorder %s16, 3
    %p55 = por %p53, %p54
    %p56 = scmp.ne.s32.totalorder %s47, %s48
    %p57 = scmp.eq.s32.totalorder %s16, 0
    %p58 = por %p56, %p57
    %p59 = scmp.ne.s32.totalorder %s47, %s48
    %p60 = scmp.eq.s32.totalorder %s17, 3
    %p61 = por %p59, %p60
    %p63 = scmp.ne.s32.totalorder %s48, %s62
    %p64 = scmp.eq.s32.totalorder %s17, 0
    %p65 = por %p63, %p64
    %s67 = sadd.s32 %s66, 1
    %p70 = scmp.eq.s32.totalorder %s11, 3
    %p71 = scmp.ne.s32.totalorder %s66, %s68
    %p72 = scmp.eq.s32.totalorder %s11, 0
    %p73 = por %p71, %p72
    %p74 = scmp.ne.s32.totalorder %s66, %s68
    %p75 = scmp.eq.s32.totalorder %s16, 3
    %p76 = por %p74, %p75
    %p77 = scmp.ne.s32.totalorder %s68, %s69
    %p78 = scmp.eq.s32.totalorder %s16, 0
    %p79 = por %p77, %p78
    %p80 = scmp.ne.s32.totalorder %s68, %s69
    %p81 = scmp.eq.s32.totalorder %s17, 3
    %p82 = por %p80, %p81
    %p84 = scmp.ne.s32.totalorder %s69, %s83
    %p85 = scmp.eq.s32.totalorder %s17, 0
    %p86 = por %p84, %p85
    %s88 = sadd.s32 %s87, 1
    %p91 = scmp.eq.s32.totalorder %s11, 3
    %p92 = scmp.ne.s32.totalorder %s87, %s89
    %p93 = scmp.eq.s32.totalorder %s11, 0
    %p94 = por %p92, %p93
    %p95 = scmp.ne.s32.totalorder %s87, %s89
    %p96 = scmp.eq.s32.totalorder %s16, 3
    %p97 = por %p95, %p96
    %p98 = scmp.ne.s32.totalorder %s89, %s90
    %p99 = scmp.eq.s32.totalorder %s16, 0
    %p100 = por %p98, %p99
    %p101 = scmp.ne.s32.totalorder %s89, %s90
    %p102 = scmp.eq.s32.totalorder %s17, 3
    %p103 = por %p101, %p102
    %p105 = scmp.ne.s32.totalorder %s90, %s104
    %p106 = scmp.eq.s32.totalorder %s17, 0
    %p107 = por %p105, %p106
    %s109 = sadd.s32 %s108, 1
    %p112 = scmp.eq.s32.totalorder %s11, 3
    %p113 = scmp.ne.s32.totalorder %s108, %s110
    %p114 = scmp.eq.s32.totalorder %s11, 0
    %p115 = por %p113, %p114
    %p116 = scmp.ne.s32.totalorder %s108, %s110
    %p117 = scmp.eq.s32.totalorder %s16, 3
    %p118 = por %p116, %p117
    %p119 = scmp.ne.s32.totalorder %s110, %s111
    %p120 = scmp.eq.s32.totalorder %s16, 0
    %p121 = por %p119, %p120
    %p122 = scmp.ne.s32.totalorder %s110, %s111
    %p123 = scmp.eq.s32.totalorder %s17, 3
    %p124 = por %p122, %p123
    %p126 = scmp.ne.s32.totalorder %s111, %s125
    %p127 = scmp.eq.s32.totalorder %s17, 0
    %p128 = por %p126, %p127
    %s129 = ssub.s32 %s11, %s18
    %p130 = scmp.eq.s32.totalorder %s129, 0
    %s132 = sadd.s32 %s131, 1
    %s133 = scalar_select %p130, %s131, %s132
    %p136 = pneg %p130
    %p137 = scmp.eq.s32.totalorder %s11, 3
    %p138 = por %p136, %p137
    %p139 = scmp.ne.s32.totalorder %s131, %s134
    %p140 = scmp.eq.s32.totalorder %s11, 0
    %p141 = por %p139, %p140
    %p142 = scmp.ne.s32.totalorder %s131, %s134
    %p143 = scmp.eq.s32.totalorder %s16, 3
    %p144 = por %p142, %p143
    %p145 = scmp.ne.s32.totalorder %s134, %s135
    %p146 = scmp.eq.s32.totalorder %s16, 0
    %p147 = por %p145, %p146
    %p148 = scmp.ne.s32.totalorder %s134, %s135
    %p149 = scmp.eq.s32.totalorder %s17, 3
    %p150 = por %p148, %p149
    %p152 = scmp.ne.s32.totalorder %s135, %s151
    %p153 = scmp.eq.s32.totalorder %s17, 0
    %p154 = por %p152, %p153
    %p155 = scmp.le.s32.totalorder 1, %s11
    %p156 = scmp.lt.s32.totalorder %s11, 5
    %p157 = pnand %p155, %p156
    %p158 = pneg %p157
    // Predicated region
    $region9: #{backbone_net.1} parent=5 // pred_check
      _
    $region10: #{backbone_net.1} parent=5 // pred_check_branch
      %160 = sbr.rel (%p157) target = $region12
    $region11: #{backbone_net.1} parent=5 // pred_region
      %s161 = ssub.s32 %s11, 1
      // Predicated region
      $region13: #{backbone_net.1} parent=11 // pred_check
        %p162 = pneg %p58
      $region14: #{backbone_net.1} parent=11 // pred_check_branch
        %164 = sbr.rel (%p162) target = $region16
      $region15: #{backbone_net.1} parent=11 // pred_region
        _
      $region16: #{backbone_net.1} parent=11 // pred_fallthru
        _
      // Predicated region
      $region17: #{backbone_net.1} parent=11 // pred_check
        %p165 = pneg %p79
      $region18: #{backbone_net.1} parent=11 // pred_check_branch
        %167 = sbr.rel (%p165) target = $region20
      $region19: #{backbone_net.1} parent=11 // pred_region
        _
      $region20: #{backbone_net.1} parent=11 // pred_fallthru
        _
      // Predicated region
      $region21: #{backbone_net.1} parent=11 // pred_check
        %p168 = pneg %p100
      $region22: #{backbone_net.1} parent=11 // pred_check_branch
        %170 = sbr.rel (%p168) target = $region24
      $region23: #{backbone_net.1} parent=11 // pred_region
        _
      $region24: #{backbone_net.1} parent=11 // pred_fallthru
        _
      // Predicated region
      $region25: #{backbone_net.1} parent=11 // pred_check
        %p171 = pneg %p121
      $region26: #{backbone_net.1} parent=11 // pred_check_branch
        %173 = sbr.rel (%p171) target = $region28
      $region27: #{backbone_net.1} parent=11 // pred_region
        _
      $region28: #{backbone_net.1} parent=11 // pred_fallthru
        _
    $region12: #{backbone_net.1} parent=5 // pred_fallthru
      _
    %p174 = scmp.lt.s32.totalorder %s11, 4
    // Predicated region
    $region29: #{backbone_net.1} parent=5 // pred_check
      %p175 = pneg %p174
    $region30: #{backbone_net.1} parent=5 // pred_check_branch
      %177 = sbr.rel (%p175) target = $region32
    $region31: #{backbone_net.1} parent=5 // pred_region
      // Predicated region
      $region33: #{backbone_net.1} parent=31 // pred_check
        %p178 = pneg %p31
      $region34: #{backbone_net.1} parent=31 // pred_check_branch
        %180 = sbr.rel (%p178) target = $region36
      $region35: #{backbone_net.1} parent=31 // pred_region
        %s181 = smul.u32 2, %s11
        %p182 = scmp.lt.s32.totalorder %s181, 7
        %s183 = scalar_select %p182, %s181, 7
        %s184 = smul.addr %s183, 8
        %s185 = scalar_lea.vmem %s0, %s184
        %s186 = smul.u32 2, %s11
      $region36: #{backbone_net.1} parent=31 // pred_fallthru
        _
    $region32: #{backbone_net.1} parent=5 // pred_fallthru
      _
    %p187 = scmp.le.s32.totalorder 1, %s11
    %p188 = scmp.lt.s32.totalorder %s11, 5
    %p189 = pnand %p187, %p188
    %p190 = pneg %p189
    // Predicated region
    $region37: #{backbone_net.1} parent=5 // pred_check
      _
    $region38: #{backbone_net.1} parent=5 // pred_check_branch
      %192 = sbr.rel (%p189) target = $region40
    $region39: #{backbone_net.1} parent=5 // pred_region
      %s193 = ssub.s32 %s11, 1
      %s194 = smul.u32 2, %s16
      %p195 = scmp.lt.s32.totalorder %s194, 7
      %s196 = scalar_select %p195, %s194, 7
      %s197 = smul.addr %s196, 8
      %s198 = scalar_lea.vmem %s0, %s197
      %p199 = pneg %p37
      %p200 = pneg %p34
      %p201 = pneg %p58
      %p202 = pneg %p55
      %p203 = pneg %p79
      %p204 = pneg %p76
      %p205 = pneg %p100
      %p206 = pneg %p97
      %p207 = pneg %p121
      %p208 = pneg %p118
      %p209 = pneg %p147
      %p210 = pneg %p144
      %s211 = smul.u32 2, %s16
      %p212 = scmp.lt.s32.totalorder %s211, 7
      %s213 = scalar_select %p212, %s211, 7
      %s214 = smul.addr %s213, 8
      %s215 = scalar_lea.vmem %s5, %s214
      %s216 = smul.u32 2, %s16
      %p217 = scmp.lt.s32.totalorder %s216, 7
      %s218 = scalar_select %p217, %s216, 7
      %s219 = smul.addr %s218, 8
      %s220 = scalar_lea.vmem %s0, %s219
      %s221 = smul.u32 2, %s16
      %s222 = smul.u32 2, %s16
      %p223 = scmp.lt.s32.totalorder %s222, 7
      %s224 = scalar_select %p223, %s222, 7
      %s225 = smul.addr %s224, 8
      %s226 = scalar_lea.vmem %s5, %s225
      %s227 = smul.u32 2, %s16
      %v228 = vld [vmem:[%s220] sm:$0xff]
      %v229 = vld [vmem:[%s220 + $0x8] sm:$0xff]
      %v230 = vld [vmem:[%s1] sm:$0xff]
      %v231 = vld [vmem:[%s1 + $0x8] sm:$0xff]
      %v232 = vld [vmem:[%s1 + $0x10] sm:$0xff]
      %v233 = vld [vmem:[%s1 + $0x18] sm:$0xff]
      %v234 = vld [vmem:[%s2] sm:$0x1]
      %v236 = vlaneseq
      %v237 = vshrl.u32 %v236, 7
      %v238 = vsub.s32 0, %v237
      %v239 = vrot.slane %v234, %v238
      %vm241 = vcmask 261120
      %v243 = vsel %vm241, %v228, 0
      %v246 = vsel %vm241, %v229, 0
      %248 = vmatprep.subr.mxu0 0.0
      %249 = vmatpush1.msra.mxu0 %v230
      %250 = vmatprep.subr.mxu0 0.0
      %251 = vmatpush1.msra.mxu0 %v231
      %252 = vmatprep.subr.mxu0 0.0
      %253 = vmatpush1.msra.mxu0 %v232
      %254 = vmatprep.subr.mxu0 0.0
      %255 = vmatpush1.msra.mxu0 %v233
      %256 = vmatprep.subr.mxu0 0.0
      %257 = vmatpush1.msra.mxu0 0.0
      %258 = vmatprep.subr.mxu0 0.0
      %259 = vmatpush1.msra.mxu0 0.0
      %260 = vmatprep.subr.mxu0 0.0
      %261 = vmatpush1.msra.mxu0 0.0
      %262 = vmatprep.subr.mxu0 0.0
      %263 = vmatpush1.msra.mxu0 0.0
      %264 = vmatprep.subr.mxu0 0.0
      %265 = vmatpush1.msra.mxu0 0.0
      %266 = vmatprep.subr.mxu0 0.0
      %267 = vmatpush1.msra.mxu0 0.0
      %268 = vmatprep.subr.mxu0 0.0
      %269 = vmatpush1.msra.mxu0 0.0
      %270 = vmatprep.subr.mxu0 0.0
      %271 = vmatpush1.msra.mxu0 0.0
      %272 = vmatprep.subr.mxu0 0.0
      %273 = vmatpush1.msra.mxu0 0.0
      %274 = vmatprep.subr.mxu0 0.0
      %275 = vmatpush1.msra.mxu0 0.0
      %276 = vmatprep.subr.mxu0 0.0
      %277 = vmatpush1.msra.mxu0 0.0
      %278 = vmatprep.subr.mxu0 0.0
      %279 = vmatpush1.msra.mxu0 0.0
      %280 = vmatprep.subr.mxu0 0.0
      %281 = vmatpush1.msra.mxu0 0.0
      %282 = vmatprep.subr.mxu0 0.0
      %283 = vmatpush1.msra.mxu0 0.0
      %284 = vmatprep.subr.mxu0 0.0
      %285 = vmatpush1.msra.mxu0 0.0
      %286 = vmatprep.subr.mxu0 0.0
      %287 = vmatpush1.msra.mxu0 0.0
      %288 = vmatprep.subr.mxu0 0.0
      %289 = vmatpush1.msra.mxu0 0.0
      %290 = vmatprep.subr.mxu0 0.0
      %291 = vmatpush1.msra.mxu0 0.0
      %292 = vmatprep.subr.mxu0 0.0
      %293 = vmatpush1.msra.mxu0 0.0
      %294 = vmatprep.subr.mxu0 0.0
      %295 = vmatpush1.msra.mxu0 0.0
      %296 = vmatprep.subr.mxu0 0.0
      %297 = vmatpush1.msra.mxu0 0.0
      %298 = vmatprep.subr.mxu0 0.0
      %299 = vmatpush1.msra.mxu0 0.0
      %300 = vmatprep.subr.mxu0 0.0
      %301 = vmatpush1.msra.mxu0 0.0
      %302 = vmatprep.subr.mxu0 0.0
      %303 = vmatpush1.msra.mxu0 0.0
      %304 = vmatprep.subr.mxu0 0.0
      %305 = vmatpush1.msra.mxu0 0.0
      %306 = vmatprep.subr.mxu0 0.0
      %307 = vmatpush1.msra.mxu0 0.0
      %308 = vmatprep.subr.mxu0 0.0
      %309 = vmatpush1.msra.mxu0 0.0
      %310 = vmatprep.subr.mxu0 0.0
      %311 = vmatpush1.msra.mxu0 0.0
      %312 = vmatprep.mubr.f32.mxu0 0.0
      %313 = vmatmul.mubr.f32.gmra.mrb[0].mxu0 %v243
      %v314 = vpop.f32.mrb[0].mxu0
      %v315 = vadd.f32 %v239, %v314
      %v316 = vpop.f32.mrb[0].mxu0
      %317 = vmatprep.mubr.f32.mxu0 0.0
      %318 = vmatmul.mubr.f32.gmra.mrb[0].mxu0 %v246
      %v319 = vpop.f32.mrb[0].mxu0
      %v320 = vadd.f32 %v239, %v319
      %v321 = vpop.f32.mrb[0].mxu0
      %322 = vdwg.mxu0
      %vm323 = vcmp.ge.f32.partialorder %v315, 0.0
      %vm324 = vcmp.ge.f32.partialorder %v320, 0.0
      %v325 = vmul.f32 %v315, 0.01
      %v326 = vmul.f32 %v320, 0.01
      %v327 = vsel %vm323, %v315, %v325
      %v328 = vsel %vm324, %v320, %v326
      %v329 = vld [vmem:[%s3] sm:$0xff]
      %v330 = vld [vmem:[%s3 + $0x8] sm:$0xff]
      %v331 = vld [vmem:[%s3 + $0x10] sm:$0xff]
      %v332 = vld [vmem:[%s3 + $0x18] sm:$0xff]
      %v333 = vld [vmem:[%s3 + $0x20] sm:$0xff]
      %v334 = vld [vmem:[%s3 + $0x28] sm:$0xff]
      %v335 = vld [vmem:[%s3 + $0x30] sm:$0xff]
      %v336 = vld [vmem:[%s3 + $0x38] sm:$0xff]
      %v337 = vld [vmem:[%s4] sm:$0x1]
      %v339 = vlaneseq
      %v340 = vshrl.u32 %v339, 7
      %v341 = vsub.s32 0, %v340
      %v342 = vrot.slane %v337, %v341
      %vm344 = vcmask 523264
      %v346 = vsel %vm344, %v327, 0
      %v349 = vsel %vm344, %v328, 0
      %351 = vmatprep.subr.mxu0 0.0
      %352 = vmatpush1.msra.mxu0 %v329
      %353 = vmatprep.subr.mxu0 0.0
      %354 = vmatpush1.msra.mxu0 %v330
      %355 = vmatprep.subr.mxu0 0.0
      %356 = vmatpush1.msra.mxu0 %v331
      %357 = vmatprep.subr.mxu0 0.0
      %358 = vmatpush1.msra.mxu0 %v332
      %359 = vmatprep.subr.mxu0 0.0
      %360 = vmatpush1.msra.mxu0 %v333
      %361 = vmatprep.subr.mxu0 0.0
      %362 = vmatpush1.msra.mxu0 %v334
      %363 = vmatprep.subr.mxu0 0.0
      %364 = vmatpush1.msra.mxu0 %v335
      %365 = vmatprep.subr.mxu0 0.0
      %366 = vmatpush1.msra.mxu0 %v336
      %367 = vmatprep.subr.mxu0 0.0
      %368 = vmatpush1.msra.mxu0 0.0
      %369 = vmatprep.subr.mxu0 0.0
      %370 = vmatpush1.msra.mxu0 0.0
      %371 = vmatprep.subr.mxu0 0.0
      %372 = vmatpush1.msra.mxu0 0.0
      %373 = vmatprep.subr.mxu0 0.0
      %374 = vmatpush1.msra.mxu0 0.0
      %375 = vmatprep.subr.mxu0 0.0
      %376 = vmatpush1.msra.mxu0 0.0
      %377 = vmatprep.subr.mxu0 0.0
      %378 = vmatpush1.msra.mxu0 0.0
      %379 = vmatprep.subr.mxu0 0.0
      %380 = vmatpush1.msra.mxu0 0.0
      %381 = vmatprep.subr.mxu0 0.0
      %382 = vmatpush1.msra.mxu0 0.0
      %383 = vmatprep.subr.mxu0 0.0
      %384 = vmatpush1.msra.mxu0 0.0
      %385 = vmatprep.subr.mxu0 0.0
      %386 = vmatpush1.msra.mxu0 0.0
      %387 = vmatprep.subr.mxu0 0.0
      %388 = vmatpush1.msra.mxu0 0.0
      %389 = vmatprep.subr.mxu0 0.0
      %390 = vmatpush1.msra.mxu0 0.0
      %391 = vmatprep.subr.mxu0 0.0
      %392 = vmatpush1.msra.mxu0 0.0
      %393 = vmatprep.subr.mxu0 0.0
      %394 = vmatpush1.msra.mxu0 0.0
      %395 = vmatprep.subr.mxu0 0.0
      %396 = vmatpush1.msra.mxu0 0.0
      %397 = vmatprep.subr.mxu0 0.0
      %398 = vmatpush1.msra.mxu0 0.0
      %399 = vmatprep.subr.mxu0 0.0
      %400 = vmatpush1.msra.mxu0 0.0
      %401 = vmatprep.subr.mxu0 0.0
      %402 = vmatpush1.msra.mxu0 0.0
      %403 = vmatprep.subr.mxu0 0.0
      %404 = vmatpush1.msra.mxu0 0.0
      %405 = vmatprep.subr.mxu0 0.0
      %406 = vmatpush1.msra.mxu0 0.0
      %407 = vmatprep.subr.mxu0 0.0
      %408 = vmatpush1.msra.mxu0 0.0
      %409 = vmatprep.subr.mxu0 0.0
      %410 = vmatpush1.msra.mxu0 0.0
      %411 = vmatprep.subr.mxu0 0.0
      %412 = vmatpush1.msra.mxu0 0.0
      %413 = vmatprep.subr.mxu0 0.0
      %414 = vmatpush1.msra.mxu0 0.0
      %415 = vmatprep.mubr.f32.mxu0 0.0
      %416 = vmatmul.mubr.f32.gmra.mrb[0].mxu0 %v346
      %v417 = vpop.f32.mrb[0].mxu0
      %v418 = vadd.f32 %v342, %v417
      %v419 = vpop.f32.mrb[0].mxu0
      %420 = vmatprep.mubr.f32.mxu0 0.0
      %421 = vmatmul.mubr.f32.gmra.mrb[0].mxu0 %v349
      %v422 = vpop.f32.mrb[0].mxu0
      %v423 = vadd.f32 %v342, %v422
      %v424 = vpop.f32.mrb[0].mxu0
      %425 = vdwg.mxu0
      %vm426 = vcmp.ge.f32.partialorder %v418, 0.0
      %vm427 = vcmp.ge.f32.partialorder %v423, 0.0
      %v428 = vmul.f32 %v418, 0.01
      %v429 = vmul.f32 %v423, 0.01
      %v430 = vsel %vm426, %v418, %v428
      %v431 = vsel %vm427, %v423, %v429
      %v432 = vmul.f32 %v430, %v430
      %v433 = vmul.f32 %v431, %v431
      %vm434 = vcmask 130048
      %v435 = vsel %vm434, %v432, 0.0
      %436 = vadd.xlane.f32.xlu0 %v435
      %v437 = vpop.xlane.xlu0 %436
      %v438 = vsel %vm434, %v433, 0.0
      %439 = vadd.xlane.f32.xlu0 %v438
      %v440 = vpop.xlane.xlu0 %439
      %v441 = vrsqrt.pop %v437
      %v442 = vmul.f32 %v437, %v441
      %vm443 = vcmp.eq.f32.partialorder %v437, inf
      %v444 = vsel %vm443, %v437, %v442
      %vm445 = vcmp.eq.f32.partialorder %v437, 0.0
      %v446 = vand.u32 %v437, 2147483648
      %v447 = vsel %vm445, %v446, %v444
      %v448 = vrsqrt.pop %v440
      %v449 = vmul.f32 %v440, %v448
      %vm450 = vcmp.eq.f32.partialorder %v440, inf
      %v451 = vsel %vm450, %v440, %v449
      %vm452 = vcmp.eq.f32.partialorder %v440, 0.0
      %v453 = vand.u32 %v440, 2147483648
      %v454 = vsel %vm452, %v453, %v451
      %v455 = vadd.f32 %v447, 1e-08
      %v456 = vadd.f32 %v454, 1e-08
      %v457 = vrcp.pop %v455
      %v458 = vrcp.pop %v456
      %v459 = vmul.f32 %v430, %v457
      %v460 = vmul.f32 %v431, %v458
      %461 = vst.msk [vmem:[%s226] sm:$0xff] %vm434, %v459
      %462 = vst.msk [vmem:[%s226 + $0x8] sm:$0xff] %vm434, %v460
      %s463 = smul.u32 2, %s16
      %p464 = scmp.lt.s32.totalorder %s463, 7
      %s465 = scalar_select %p464, %s463, 7
      %s466 = smul.addr %s465, 8
      %s467 = scalar_lea.vmem %s5, %s466
      // Predicated region
      $region41: #{backbone_net.1} parent=39 // pred_check
        %p468 = pneg %p144
      $region42: #{backbone_net.1} parent=39 // pred_check_branch
        %470 = sbr.rel (%p468) target = $region44
      $region43: #{backbone_net.1} parent=39 // pred_region
        %s471 = smul.u32 2, %s16
      $region44: #{backbone_net.1} parent=39 // pred_fallthru
        _
    $region40: #{backbone_net.1} parent=5 // pred_fallthru
      _
    %p472 = scmp.le.s32.totalorder 2, %s11
    // Predicated region
    $region45: #{backbone_net.1} parent=5 // pred_check
      %p473 = pneg %p472
    $region46: #{backbone_net.1} parent=5 // pred_check_branch
      %475 = sbr.rel (%p473) target = $region48
    $region47: #{backbone_net.1} parent=5 // pred_region
      %s476 = ssub.s32 %s11, 2
      // Predicated region
      $region49: #{backbone_net.1} parent=47 // pred_check
        %p477 = pneg %p150
      $region50: #{backbone_net.1} parent=47 // pred_check_branch
        %479 = sbr.rel (%p477) target = $region52
      $region51: #{backbone_net.1} parent=47 // pred_region
        %s480 = smul.u32 2, %s17
        %p481 = scmp.lt.s32.totalorder %s480, 7
        %s482 = scalar_select %p481, %s480, 7
        %s483 = smul.addr %s482, 8
        %s484 = scalar_lea.vmem %s5, %s483
      $region52: #{backbone_net.1} parent=47 // pred_fallthru
        _
    $region48: #{backbone_net.1} parent=5 // pred_fallthru
      _
  $region6: #{backbone_net.1} parent=0 // loop_footer
    %s15 = sadd.s32 1, %s11
  $region7: #{backbone_net.1} parent=0 // loop_footer_branch
    %10 = sbr.rel target = $region3
  $region8: #{backbone_net.1} parent=0 // loop_exit
    _

</llo_original>
